<compile_context>
chip_gen: v7x
topology: tpu7x:2x2x1
jax: 0.10.0
libtpu: 0.0.40
codegen_flags: <defaults>
</compile_context>

<pallas_src>
import functools

import jax
import jax.numpy as jnp
from jax.experimental import pallas as pl
from jax.experimental.pallas import tpu as pltpu

_LANE = 128   # lane width of the flattened 2-D slab
_TM = 2048    # rows per block: (2048,128) f32 = 1 MiB per input block


def _num_tensorcores() -> int:
    """Best-effort TensorCores-per-chip count; defaults to 1 (v5e/v6e)."""
    try:
        info = pltpu.get_tpu_info()
        for name in ("num_cores", "core_count", "num_tensorcores",
                     "tensor_cores_per_chip", "cores_per_chip"):
            v = getattr(info, name, None)
            if isinstance(v, int) and v > 0:
                return min(2, v)
    except Exception:
        pass
    try:
        d = jax.devices()[0]
        for name in ("num_cores", "core_count"):
            v = getattr(d, name, None)
            if isinstance(v, int) and v > 0:
                return min(2, v)
    except Exception:
        pass
    return 1


def _bce_kernel(x_ref, y_ref, o_ref, acc_ref, *, blocks_per_core, total_blocks,
                rows_last, mask_last, has_overflow):
    c = pl.program_id(0)          # core-split axis ("parallel")
    i = pl.program_id(1)          # reduction axis  ("arbitrary")
    tm, lane = x_ref.shape
    blk = c * blocks_per_core + i

    @pl.when(i == 0)
    def _():
        acc_ref[...] = jnp.zeros_like(acc_ref)

    # Per-tile upcast: e.g. bf16 inputs stream bf16 bytes over HBM.
    x = x_ref[...].astype(jnp.float32)
    y = y_ref[...].astype(jnp.float32)

    # PyTorch nn.BCELoss clamps each log term at -100 for stability.
    log_x = jnp.maximum(jnp.log(x), -100.0)
    log_1mx = jnp.maximum(jnp.log(1.0 - x), -100.0)
    # -(y*log_x + (1-y)*log_1mx)  ==  -(y*(log_x - log_1mx) + log_1mx)
    loss = -(y * (log_x - log_1mx) + log_1mx)

    def accumulate(v):
        # Fold rows into the resident (8, lane) accumulator with pure VPU
        # vreg adds; the single cross-sublane reduce happens in the wrapper.
        if tm % 8 == 0:
            acc_ref[...] += v.reshape(tm // 8, 8, lane).sum(axis=0)
        else:  # tiny-input fallback (m < _TM and m % 8 != 0)
            acc_ref[0:1, :] += v.sum(axis=0, keepdims=True)

    last_valid = total_blocks - 1
    if mask_last:
        # Interior full blocks: no mask work on the hot path.
        @pl.when(blk < last_valid)
        def _():
            accumulate(loss)

        # Only the single partial last block pays for the row-granular mask
        # (its out-of-range rows hold undefined VMEM data -> must be zeroed).
        @pl.when(blk == last_valid)
        def _():
            rid = jax.lax.broadcasted_iota(jnp.int32, (tm, lane), 0)
            accumulate(jnp.where(rid < rows_last, loss, 0.0))
        # Clamped overflow blocks (blk > last_valid): contribute nothing.
    elif has_overflow:
        # Overflow-block skip is one scalar compare per grid step.
        @pl.when(blk <= last_valid)
        def _():
            accumulate(loss)
    else:
        accumulate(loss)

    @pl.when(i == pl.num_programs(1) - 1)
    def _():
        o_ref[...] = acc_ref[...][None, :, :]   # (1, 8, lane) lane-dense partial


def bce_loss(x, y):
    """Mean binary cross-entropy of x (probabilities) against targets y."""
    assert x.shape == y.shape
    total_n = x.size

    xf = x.reshape(-1)
    yf = y.reshape(-1)

    # <128-element tail handled in a trivial JAX epilogue -- no full-tensor
    # pad/copy just to 128-align the kernel input.
    n_rem = total_n % _LANE
    n_full = total_n - n_rem

    tail_sum = None
    if n_rem:
        xt = xf[n_full:].astype(jnp.float32)
        yt = yf[n_full:].astype(jnp.float32)
        lx = jnp.maximum(jnp.log(xt), -100.0)
        l1 = jnp.maximum(jnp.log(1.0 - xt), -100.0)
        tail_sum = jnp.sum(-(yt * (lx - l1) + l1))

    if n_full == 0:
        total = tail_sum
    else:
        if n_rem:
            x2 = xf[:n_full].reshape(-1, _LANE)
            y2 = yf[:n_full].reshape(-1, _LANE)
        else:
            x2 = xf.reshape(-1, _LANE)
            y2 = yf.reshape(-1, _LANE)

        m = n_full // _LANE
        tm = _TM if m >= _TM else m                    # small input: block = full dim
        total_blocks = (m + tm - 1) // tm
        ncores = _num_tensorcores() if total_blocks > 1 else 1
        bpc = (total_blocks + ncores - 1) // ncores    # blocks per core
        rows_last = m - (total_blocks - 1) * tm        # valid rows in last block
        mask_last = rows_last != tm                    # static (trace-time)
        has_overflow = ncores * bpc != total_blocks    # static (trace-time)

        if has_overflow:
            def in_map(c, i):
                # Clamp overflow blocks onto valid data; kernel skips them.
                return (jnp.minimum(c * bpc + i, total_blocks - 1), 0)
        else:
            def in_map(c, i):
                return (c * bpc + i, 0)

        kernel = functools.partial(
            _bce_kernel, blocks_per_core=bpc, total_blocks=total_blocks,
            rows_last=rows_last, mask_last=mask_last, has_overflow=has_overflow)

        out = pl.pallas_call(
            kernel,
            out_shape=jax.ShapeDtypeStruct((ncores, 8, _LANE), jnp.float32),
            grid_spec=pltpu.PrefetchScalarGridSpec(
                num_scalar_prefetch=0,
                grid=(ncores, bpc),
                in_specs=[
                    pl.BlockSpec((tm, _LANE), in_map),
                    pl.BlockSpec((tm, _LANE), in_map),
                ],
                out_specs=pl.BlockSpec((1, 8, _LANE), lambda c, i: (c, 0, 0)),
                scratch_shapes=[pltpu.VMEM((8, _LANE), jnp.float32)],
            ),
            compiler_params=pltpu.CompilerParams(
                dimension_semantics=("parallel", "arbitrary"),
                vmem_limit_bytes=32 * 1024 * 1024,
            ),
            cost_estimate=pl.CostEstimate(
                flops=8 * n_full,
                transcendentals=2 * n_full,
                bytes_accessed=(n_full * x.dtype.itemsize
                                + n_full * y.dtype.itemsize
                                + ncores * 8 * _LANE * 4),
            ),
        )(x2, y2)

        total = jnp.sum(out)
        if tail_sum is not None:
            total = total + tail_sum

    return total / jnp.float32(total_n)


if __name__ == "__main__":
    key = jax.random.PRNGKey(0)
    kx, ky = jax.random.split(key)

    B, C, H, W = 2, 4, 16, 16
    # x must be valid probabilities in (0, 1); y are {0, 1} targets.
    x = jax.nn.sigmoid(jax.random.normal(kx, (B, C, H, W), jnp.float32))
    y = jax.random.bernoulli(ky, 0.5, (B, C, H, W)).astype(jnp.float32)

    loss = bce_loss(x, y)
    jax.block_until_ready(loss)

    # Reference check against plain JAX (PyTorch-style -100 clamp).
    ref = jnp.mean(
        -(y * jnp.maximum(jnp.log(x), -100.0)
          + (1.0 - y) * jnp.maximum(jnp.log(1.0 - x), -100.0))
    )
    assert jnp.allclose(loss, ref, rtol=1e-5, atol=1e-6), (loss, ref)

    print("KERNEL_OK")
</pallas_src>

<mosaic_0001>
module attributes {stable_mosaic.version = 11 : i64} {
  func.func @_bce_kernel(%arg0: i32, %arg1: i32, %arg2: memref<16x128xf32, #tpu.memory_space<vmem>>, %arg3: memref<16x128xf32, #tpu.memory_space<vmem>>, %arg4: memref<1x8x128xf32, #tpu.memory_space<vmem>>, %arg5: memref<8x128xf32, #tpu.memory_space<vmem>>) attributes {dimension_semantics = [#tpu.dimension_semantics<parallel>, #tpu.dimension_semantics<arbitrary>], iteration_bounds = array<i64: 1, 1>, scalar_prefetch = 0 : i64, scratch_operands = 1 : i64, tpu.core_type = #tpu.core_type<tc>, window_params = [{transform_indices = @transform_0, window_bounds = array<i64: 16, 128>}, {transform_indices = @transform_1, window_bounds = array<i64: 16, 128>}, {transform_indices = @transform_2, window_bounds = array<i64: 1, 8, 128>}]} {
    %c0_i32 = arith.constant 0 : i32
    %0 = arith.cmpi eq, %arg1, %c0_i32 : i32
    %1 = arith.extui %0 : i1 to i32
    %c0_i32_0 = arith.constant 0 : i32
    %2 = arith.cmpi ne, %1, %c0_i32_0 : i32
    scf.if %2 {
      %cst_14 = arith.constant 0.000000e+00 : f32
      %26 = vector.broadcast %cst_14 : f32 to vector<8x128xf32>
      %c0_15 = arith.constant 0 : index
      %c0_16 = arith.constant 0 : index
      %27 = vector.load %arg5[%c0_15, %c0_16] : memref<8x128xf32, #tpu.memory_space<vmem>>, vector<8x128xf32>
      tpu.vector_store %arg5[%c0_15, %c0_16], %26 {strides = array<i32>} : memref<8x128xf32, #tpu.memory_space<vmem>>, vector<8x128xf32>,
    } else {
    }
    %c0 = arith.constant 0 : index
    %c0_1 = arith.constant 0 : index
    %3 = vector.load %arg2[%c0, %c0_1] : memref<16x128xf32, #tpu.memory_space<vmem>>, vector<16x128xf32>
    %c0_2 = arith.constant 0 : index
    %c0_3 = arith.constant 0 : index
    %4 = vector.load %arg3[%c0_2, %c0_3] : memref<16x128xf32, #tpu.memory_space<vmem>>, vector<16x128xf32>
    %5 = math.log %3 : vector<16x128xf32>
    %cst = arith.constant -1.000000e+02 : f32
    %6 = vector.broadcast %cst : f32 to vector<16x128xf32>
    %7 = arith.maximumf %5, %6 : vector<16x128xf32>
    %cst_4 = arith.constant 1.000000e+00 : f32
    %8 = vector.broadcast %cst_4 : f32 to vector<16x128xf32>
    %9 = arith.subf %8, %3 : vector<16x128xf32>
    %10 = math.log %9 : vector<16x128xf32>
    %cst_5 = arith.constant -1.000000e+02 : f32
    %11 = vector.broadcast %cst_5 : f32 to vector<16x128xf32>
    %12 = arith.maximumf %10, %11 : vector<16x128xf32>
    %13 = arith.subf %7, %12 : vector<16x128xf32>
    %14 = arith.mulf %4, %13 : vector<16x128xf32>
    %15 = arith.addf %14, %12 : vector<16x128xf32>
    %cst_6 = arith.constant 0.000000e+00 : f32
    %16 = vector.broadcast %cst_6 : f32 to vector<16x128xf32>
    %17 = arith.subf %16, %15 : vector<16x128xf32>
    %c0_7 = arith.constant 0 : index
    %c0_8 = arith.constant 0 : index
    %18 = vector.load %arg5[%c0_7, %c0_8] : memref<8x128xf32, #tpu.memory_space<vmem>>, vector<8x128xf32>
    %19 = vector.shape_cast %17 : vector<16x128xf32> to vector<2x8x128xf32>
    %cst_9 = arith.constant dense<0.000000e+00> : vector<8x128xf32>
    %20 = vector.multi_reduction <add>, %19, %cst_9 [0] : vector<2x8x128xf32> to vector<8x128xf32>
    %21 = arith.addf %18, %20 : vector<8x128xf32>
    %c0_10 = arith.constant 0 : index
    %c0_11 = arith.constant 0 : index
    %22 = vector.load %arg5[%c0_10, %c0_11] : memref<8x128xf32, #tpu.memory_space<vmem>>, vector<8x128xf32>
    tpu.vector_store %arg5[%c0_10, %c0_11], %21 {strides = array<i32>} : memref<8x128xf32, #tpu.memory_space<vmem>>, vector<8x128xf32>,
    %c0_i32_12 = arith.constant 0 : i32
    %23 = arith.cmpi eq, %arg1, %c0_i32_12 : i32
    %24 = arith.extui %23 : i1 to i32
    %c0_i32_13 = arith.constant 0 : i32
    %25 = arith.cmpi ne, %24, %c0_i32_13 : i32
    scf.if %25 {
      %c0_14 = arith.constant 0 : index
      %c0_15 = arith.constant 0 : index
      %26 = vector.load %arg5[%c0_14, %c0_15] : memref<8x128xf32, #tpu.memory_space<vmem>>, vector<8x128xf32>
      %27 = vector.shape_cast %26 : vector<8x128xf32> to vector<1x8x128xf32>
      %c0_16 = arith.constant 0 : index
      %c0_17 = arith.constant 0 : index
      %c0_18 = arith.constant 0 : index
      %28 = vector.load %arg4[%c0_16, %c0_17, %c0_18] : memref<1x8x128xf32, #tpu.memory_space<vmem>>, vector<1x8x128xf32>
      tpu.vector_store %arg4[%c0_16, %c0_17, %c0_18], %27 {strides = array<i32>} : memref<1x8x128xf32, #tpu.memory_space<vmem>>, vector<1x8x128xf32>,
    } else {
    }
    return
  }
  func.func @transform_0(%arg0: i32, %arg1: i32) -> (i32, i32) {
    %c1_i32 = arith.constant 1 : i32
    %0 = arith.muli %arg0, %c1_i32 : i32
    %1 = arith.addi %0, %arg1 : i32
    %c0_i32 = arith.constant 0 : i32
    %c0_i32_0 = arith.constant 0 : i32
    return %1, %c0_i32 : i32, i32
  }
  func.func @transform_1(%arg0: i32, %arg1: i32) -> (i32, i32) {
    %c1_i32 = arith.constant 1 : i32
    %0 = arith.muli %arg0, %c1_i32 : i32
    %1 = arith.addi %0, %arg1 : i32
    %c0_i32 = arith.constant 0 : i32
    %c0_i32_0 = arith.constant 0 : i32
    return %1, %c0_i32 : i32, i32
  }
  func.func @transform_2(%arg0: i32, %arg1: i32) -> (i32, i32, i32) {
    %c0_i32 = arith.constant 0 : i32
    %c0_i32_0 = arith.constant 0 : i32
    %c0_i32_1 = arith.constant 0 : i32
    return %arg0, %c0_i32, %c0_i32_0 : i32, i32, i32
  }
}

</mosaic_0001>

<llo_original>
// kernel: tpu_custom_call.1
$region0: #{tpu_custom_call.1}
  #allocation0 [shape = 'u32[]', space=smem, size = 0x4, offset = 0x4, fixed_abs, tag = 'smem constant byte address 0x4 - core index']
  #allocation1 [shape = 'u32[144,128]{1,0:T(1,128)}', space=vmem, size = 0x12000, scoped, tag = 'internal scratch']
  #allocation2 [shape = 'f32[8,128]{1,0:T(8,128)}', space=vmem, size = 0x1000, scoped, tag = 'scratch operand']
  %s0 = inlined_call_operand.hbm [shape: f32[16,128], index: 0, kind: input, shape index: {}]
  %s1 = inlined_call_operand.hbm [shape: f32[16,128], index: 1, kind: input, shape index: {}]
  %s2 = inlined_call_operand.hbm [shape: f32[1,8,128], index: 2, kind: output, shape index: {}]
  %s3 = sld [smem:[#allocation0]]
  $region34: #{tpu_custom_call.1} parent=0
    _
  %s5 = ssub.s32 1, %s3
  %s6 = scalar_select 0, %s5, %s3
  $region1: #{tpu_custom_call.1} parent=0
    #allocation3 [shape = 'u8[8192]{0}', space=vmem, size = 0x2000, scoped, tag = 'input window, operand 0, single buffered']
    #allocation4 [shape = 's32[1]{0}', space=sflag, size = 0x4, scoped, tag = 'scoped memory for tpu_custom_call.1']
    #allocation5 [shape = 's32[1]{0}', space=sflag, size = 0x4, scoped, tag = 'scoped memory for tpu_custom_call.1']
    #allocation6 [shape = 'u8[8192]{0}', space=vmem, size = 0x2000, scoped, tag = 'input window, operand 1, single buffered']
    #allocation7 [shape = 's32[1]{0}', space=sflag, size = 0x4, scoped, tag = 'scoped memory for tpu_custom_call.1']
    #allocation8 [shape = 'u8[4096]{0}', space=vmem, size = 0x1000, scoped, tag = 'output window, operand 0, single buffered']
    %7 = vsyncpa [#allocation4], 0
    %8 = vsyncpa [#allocation7], 0
    %9 = vsyncpa [#allocation5], 0
    // Predicated region
    $region2: #{tpu_custom_call.1} parent=1 // pred_check
      _
    $region3: #{tpu_custom_call.1} parent=1 // pred_check_branch
      %11 = sbr.rel (0) target = $region5
    $region4: #{tpu_custom_call.1} parent=1 // pred_region
      %s12 = sadd.s32 0, 0
      %s13 = smul.u32 2, %s12
      %s15 = ssub.s32 256, 256
      %16 = vsyncadd [#allocation4], %s15
      %s17 = smul.addr %s13, 128
      %s18 = scalar_lea.hbm %s0, %s17
      %s19 = sshll.u32 [#allocation3], 4
      %s20 = int_to_ptr.vmem [resolvable:$true] %s19
      %25 = dma.hbm_to_vmem [thread:$0]  %s18, 256, %s20, [#allocation4], 128, 128, 8
    $region5: #{tpu_custom_call.1} parent=1 // pred_fallthru
      _
    // Predicated region
    $region6: #{tpu_custom_call.1} parent=1 // pred_check
      _
    $region7: #{tpu_custom_call.1} parent=1 // pred_check_branch
      %27 = sbr.rel (0) target = $region9
    $region8: #{tpu_custom_call.1} parent=1 // pred_region
      %s28 = sadd.s32 0, 0
      %s29 = smul.u32 2, %s28
      %s31 = ssub.s32 256, 256
      %32 = vsyncadd [#allocation7], %s31
      %s33 = smul.addr %s29, 128
      %s34 = scalar_lea.hbm %s1, %s33
      %s35 = sshll.u32 [#allocation6], 4
      %s36 = int_to_ptr.vmem [resolvable:$true] %s35
      %41 = dma.hbm_to_vmem [thread:$0]  %s34, 256, %s36, [#allocation7], 128, 128, 8
    $region9: #{tpu_custom_call.1} parent=1 // pred_fallthru
      _
    // Predicated region
    $region10: #{tpu_custom_call.1} parent=1 // pred_check
      _
    $region11: #{tpu_custom_call.1} parent=1 // pred_check_branch
      %43 = sbr.rel (0) target = $region13
    $region12: #{tpu_custom_call.1} parent=1 // pred_region
      %44 = dma.done [#allocation4], 256
    $region13: #{tpu_custom_call.1} parent=1 // pred_fallthru
      _
    // Predicated region
    $region14: #{tpu_custom_call.1} parent=1 // pred_check
      _
    $region15: #{tpu_custom_call.1} parent=1 // pred_check_branch
      %46 = sbr.rel (0) target = $region17
    $region16: #{tpu_custom_call.1} parent=1 // pred_region
      %47 = dma.done [#allocation7], 256
    $region17: #{tpu_custom_call.1} parent=1 // pred_fallthru
      _
    %s48 = sadd.s32 0, 0
    %s49 = smul.u32 2, %s48
    %s50 = sadd.s32 0, 0
    %s51 = smul.u32 2, %s50
    %p52 = scmp.eq.s32.totalorder 0, 0
    // Predicated region
    $region18: #{tpu_custom_call.1} parent=1 // pred_check
      %p53 = pneg %p52
    $region19: #{tpu_custom_call.1} parent=1 // pred_check_branch
      %55 = sbr.rel (%p53) target = $region21
    $region20: #{tpu_custom_call.1} parent=1 // pred_region
      %56 = vst [vmem:[#allocation2] sm:$0xff] 0.0
    $region21: #{tpu_custom_call.1} parent=1 // pred_fallthru
      _
    %v57 = vld [vmem:[#allocation3] sm:$0xff]
    %v58 = vld [vmem:[#allocation3 + $0x8] sm:$0xff]
    %v59 = vld [vmem:[#allocation6] sm:$0xff]
    %v60 = vld [vmem:[#allocation6 + $0x8] sm:$0xff]
    %v61 = vlog2.pop %v57
    %v62 = vmul.f32 %v61, 0.6931472
    %v63 = vlog2.pop %v58
    %v64 = vmul.f32 %v63, 0.6931472
    %v65 = vmax.f32 %v62, -100.0
    %v66 = vmax.f32 %v64, -100.0
    %v67 = vsub.f32 1.0, %v57
    %v68 = vsub.f32 1.0, %v58
    %v69 = vlog2.pop %v67
    %v70 = vmul.f32 %v69, 0.6931472
    %v71 = vlog2.pop %v68
    %v72 = vmul.f32 %v71, 0.6931472
    %v73 = vmax.f32 %v70, -100.0
    %v74 = vmax.f32 %v72, -100.0
    %v75 = vsub.f32 %v65, %v73
    %v76 = vsub.f32 %v66, %v74
    %v77 = vmul.f32 %v59, %v75
    %v78 = vmul.f32 %v60, %v76
    %v79 = vadd.f32 %v77, %v73
    %v80 = vadd.f32 %v78, %v74
    %v81 = vsub.f32 0.0, %v79
    %v82 = vsub.f32 0.0, %v80
    %v83 = vld [vmem:[#allocation2] sm:$0xff]
    %v84 = vadd.f32 %v81, %v82
    %v85 = vadd.f32 %v83, %v84
    %86 = vst [vmem:[#allocation2] sm:$0xff] %v85
    // Predicated region
    $region22: #{tpu_custom_call.1} parent=1 // pred_check
      %p87 = pneg %p52
    $region23: #{tpu_custom_call.1} parent=1 // pred_check_branch
      %89 = sbr.rel (%p87) target = $region25
    $region24: #{tpu_custom_call.1} parent=1 // pred_region
      %v90 = vld [vmem:[#allocation2] sm:$0xff]
      %91 = vst [vmem:[#allocation8] sm:$0xff] %v90
    $region25: #{tpu_custom_call.1} parent=1 // pred_fallthru
      _
    // Predicated region
    $region26: #{tpu_custom_call.1} parent=1 // pred_check
      _
    $region27: #{tpu_custom_call.1} parent=1 // pred_check_branch
      %93 = sbr.rel (0) target = $region29
    $region28: #{tpu_custom_call.1} parent=1 // pred_region
      %s95 = ssub.s32 128, 128
      %96 = vsyncadd [#allocation5], %s95
      %s98 = sshll.u32 [#allocation8], 4
      %s99 = int_to_ptr.vmem [resolvable:$true] %s98
      %101 = dma.vmem_to_hbm [thread:$0]  %s99, 128, %s2, [#allocation5]
    $region29: #{tpu_custom_call.1} parent=1 // pred_fallthru
      _
    // Predicated region
    $region30: #{tpu_custom_call.1} parent=1 // pred_check
      _
    $region31: #{tpu_custom_call.1} parent=1 // pred_check_branch
      %103 = sbr.rel (0) target = $region33
    $region32: #{tpu_custom_call.1} parent=1 // pred_region
      %104 = dma.done [#allocation5], 128
    $region33: #{tpu_custom_call.1} parent=1 // pred_fallthru
      _
    %105 = vsyncpa [#allocation4], 1
    %106 = vsyncpa [#allocation7], 1
    %107 = vsyncpa [#allocation5], 1

</llo_original>
